<compile_context>
chip_gen: v5e
topology: v5e:2x2
jax: 0.10.0
libtpu: 0.0.40
codegen_flags: <defaults>
</compile_context>

<pallas_src>
import jax
import jax.numpy as jnp
from jax.experimental import pallas as pl
from jax.experimental.pallas import tpu as pltpu

PAD_VAL = 1e6
VMEM_LIMIT = 48 * 1024 * 1024


def _round_up(x, m):
    return (x + m - 1) // m * m


# ------------------------------------------------------------------
# Kernel 1: fused bidirectional Chamfer, L1, K=1
#   forward:  per-query  min_j sum_c |q_ic - r_jc|
#   backward: per-ref    min_i sum_c |q_ic - r_jc|
# grid = (ref tiles j [outer], query tiles i [inner]); both axes are reductions.
# ------------------------------------------------------------------
def _chamfer_kernel(q_ref, r_ref, fwd_ref, back_ref, colmin_sc):
    j = pl.program_id(0)          # ref (lane) tile, outer
    i = pl.program_id(1)          # query (sublane) tile, inner
    tq = q_ref.shape[0]

    d = (jnp.abs(q_ref[:, 0:1] - r_ref[0:1, :])
         + jnp.abs(q_ref[:, 1:2] - r_ref[1:2, :])
         + jnp.abs(q_ref[:, 2:3] - r_ref[2:3, :]))          # (tq, tr) L1 tile

    row_min = jnp.min(d, axis=1, keepdims=True)              # (tq, 1)  per-query
    col_min = jnp.min(d, axis=0, keepdims=True)              # (1, tr)  per-ref

    # ---- forward: accumulate over the outer j axis directly in the resident
    #      (Nq_pad, 1) output block, addressed with a dynamic sublane slice.
    r0 = pl.multiple_of(i * tq, tq)

    @pl.when(j == 0)
    def _():
        fwd_ref[pl.ds(r0, tq), :] = row_min

    @pl.when(j > 0)
    def _():
        fwd_ref[pl.ds(r0, tq), :] = jnp.minimum(fwd_ref[pl.ds(r0, tq), :], row_min)

    # ---- backward: accumulate over the inner i axis in a lane-dense scratch,
    #      store once per j-stripe into the lane-dense (1, tr) output block.
    @pl.when(i == 0)
    def _():
        colmin_sc[...] = col_min

    @pl.when(i > 0)
    def _():
        colmin_sc[...] = jnp.minimum(colmin_sc[...], col_min)

    @pl.when(i == pl.num_programs(1) - 1)
    def _():
        back_ref[...] = colmin_sc[...]


def chamfer_min_l1(q_pad, rT_pad, *, tq, tr):
    """q_pad (Nq_p, 3) and rT_pad (3, Nr_p), both PAD_VAL-padded.
    Returns (per-query min L1 dist (Nq_p,), per-ref min L1 dist (Nr_p,))."""
    nq_p = q_pad.shape[0]
    nr_p = rT_pad.shape[1]
    fwd, back = pl.pallas_call(
        _chamfer_kernel,
        out_shape=(jax.ShapeDtypeStruct((nq_p, 1), jnp.float32),
                   jax.ShapeDtypeStruct((1, nr_p), jnp.float32)),
        grid=(nr_p // tr, nq_p // tq),                 # j outer, i inner
        in_specs=[pl.BlockSpec((tq, 3), lambda j, i: (i, 0)),
                  pl.BlockSpec((3, tr), lambda j, i: (0, j))],
        out_specs=(pl.BlockSpec((nq_p, 1), lambda j, i: (0, 0)),
                   pl.BlockSpec((1, tr), lambda j, i: (0, j))),
        scratch_shapes=[pltpu.VMEM((1, tr), jnp.float32)],
        compiler_params=pltpu.CompilerParams(
            dimension_semantics=("arbitrary", "arbitrary"),
            vmem_limit_bytes=VMEM_LIMIT),
    )(q_pad, rT_pad)
    return fwd[:, 0], back[0, :]


# ------------------------------------------------------------------
# Kernel 2: pairwise squared-L2 distance matrix (init-only, feeds self-KNN K=12)
# ------------------------------------------------------------------
def _sqdist_kernel(q_ref, r_ref, o_ref):
    dx = q_ref[:, 0:1] - r_ref[0:1, :]
    dy = q_ref[:, 1:2] - r_ref[1:2, :]
    dz = q_ref[:, 2:3] - r_ref[2:3, :]
    o_ref[...] = dx * dx + dy * dy + dz * dz


def pairwise_sqdist(query, ref, *, tq=512, tr=1024):
    nq, nr = query.shape[0], ref.shape[0]
    tq = min(tq, _round_up(nq, 8))
    tr = min(tr, _round_up(nr, 128))
    nq_p, nr_p = _round_up(nq, tq), _round_up(nr, tr)
    q = jnp.zeros((nq_p, 3), jnp.float32).at[:nq].set(query)
    rT = jnp.full((3, nr_p), PAD_VAL, jnp.float32).at[:, :nr].set(ref.T)
    out = pl.pallas_call(
        _sqdist_kernel,
        out_shape=jax.ShapeDtypeStruct((nq_p, nr_p), jnp.float32),
        grid=(nq_p // tq, nr_p // tr),
        in_specs=[pl.BlockSpec((tq, 3), lambda i, j: (i, 0)),
                  pl.BlockSpec((3, tr), lambda i, j: (0, j))],
        out_specs=pl.BlockSpec((tq, tr), lambda i, j: (i, j)),
        compiler_params=pltpu.CompilerParams(
            dimension_semantics=("parallel", "parallel"),
            vmem_limit_bytes=VMEM_LIMIT),
    )(q, rT)
    return out[:nq, :]        # padded ref columns hold huge distances


# ------------------------------------------------------------------
# Kernel 3: smoothness loss: sum_{i,k} ||f[nn[i,0]] - f[nn[i,k]]||_2
# Input g is the gathered flow, lane-major in N: g[c,k,i] = flow[nn[i,k], c].
# ------------------------------------------------------------------
def _smooth_sum_kernel(g_ref, o_ref):
    i = pl.program_id(0)
    d0 = g_ref[0, 0:1, :] - g_ref[0, 1:, :]           # (K-1, tn)
    d1 = g_ref[1, 0:1, :] - g_ref[1, 1:, :]
    d2 = g_ref[2, 0:1, :] - g_ref[2, 1:, :]
    nrm = jnp.sqrt(d0 * d0 + d1 * d1 + d2 * d2)       # (K-1, tn)
    part = jnp.sum(nrm)

    @pl.when(i == 0)
    def _():
        o_ref[...] = jnp.zeros_like(o_ref)

    o_ref[...] += part


def smoothness_loss(est_flow, nnT_flat, num_points, K, *, tn=16384):
    """est_flow (N,3); nnT_flat (K*N,) int32 in k-major order (precomputed)."""
    n = num_points
    fT = est_flow.T                                          # (3, N), cheap
    g = jnp.take(fT, nnT_flat, axis=1).reshape(3, K, n)      # lane-major in N
    tn = min(tn, _round_up(n, 128))
    n_pad = _round_up(n, tn)
    g = jnp.pad(g, ((0, 0), (0, 0), (0, n_pad - n)))         # zero pad -> norm 0
    total = pl.pallas_call(
        _smooth_sum_kernel,
        out_shape=jax.ShapeDtypeStruct((1, 1), jnp.float32),
        grid=(n_pad // tn,),
        in_specs=[pl.BlockSpec((3, K, tn), lambda i: (0, 0, i))],
        out_specs=pl.BlockSpec((1, 1), lambda i: (0, 0)),
        compiler_params=pltpu.CompilerParams(
            dimension_semantics=("arbitrary",),
            vmem_limit_bytes=VMEM_LIMIT),
    )(g)
    return total[0, 0] / (n * (K - 1))


# ------------------------------------------------------------------
# GeneralLoss equivalent (dist_mode='knn_points')
# ------------------------------------------------------------------
class GeneralLossPallas:
    def __init__(self, pc1, pc2=None, dist_mode='knn_points', K=12,
                 smooth_weight=1.0, max_radius=2, loss_norm=1,
                 forward_weight=0.0, pc2_smooth=False,
                 chamfer_tq=512, chamfer_tr=2048,
                 sqdist_tq=512, sqdist_tr=1024, smooth_tn=16384):
        assert dist_mode == 'knn_points'
        self.K = K
        self.max_radius = max_radius
        self.smooth_weight = smooth_weight
        self.forward_weight = forward_weight
        self.pc2_smooth = pc2_smooth
        self.loss_norm = loss_norm
        self.pc2 = pc2
        self.smooth_tn = smooth_tn
        self._chamfer_tr_default = chamfer_tr

        n1 = pc1.shape[1]
        self._tq = min(chamfer_tq, _round_up(n1, 8))
        self._nq_p = _round_up(n1, self._tq)

        # hoisted out of __call__: pad + transpose pc2 once (hot-path glue removal)
        if pc2 is not None:
            n2 = pc2.shape[1]
            self._n2 = n2
            self._tr = min(chamfer_tr, _round_up(n2, 128))
            nr_p = _round_up(n2, self._tr)
            self._pc2T_pad = jnp.full((3, nr_p), PAD_VAL, jnp.float32).at[:, :n2].set(pc2[0].T)
        else:
            self._pc2T_pad = None

        self.NN_pc1 = None
        self._nnT_flat = None
        if K > 0:
            p1 = pc1[0]
            d = pairwise_sqdist(p1, p1, tq=sqdist_tq, tr=sqdist_tr)   # Pallas
            neg_d, nn = jax.lax.top_k(-d, K)                          # ascending dists
            dist1 = -neg_d                                            # squared L2
            nn = nn.astype(jnp.int32)
            # mask_NN_by_dist: neighbors farther than max_radius -> first neighbor
            nn = jnp.where(dist1 > max_radius, nn[:, 0:1], nn)
            self.NN_pc1 = nn[None]
            # k-major flat gather indices so the smoothness gather lands lane-major
            self._nnT_flat = nn.T.reshape(-1)

    def __call__(self, pc1, est_flow, pc2):
        deformed = (pc1 + est_flow)[0]                       # (N1, 3)
        n1 = deformed.shape[0]
        # padded deformed rows use the 1e6 sentinel so the backward direction
        # (min over queries) is not poisoned.
        q_pad = jnp.full((self._nq_p, 3), PAD_VAL, jnp.float32).at[:n1, :].set(deformed)

        if (self.pc2 is not None) and (pc2 is self.pc2):
            rT_pad, n2, tr = self._pc2T_pad, self._n2, self._tr
        else:  # semantics-preserving fallback if a different pc2 is passed
            n2 = pc2.shape[1]
            tr = min(self._chamfer_tr_default, _round_up(n2, 128))
            nr_p = _round_up(n2, tr)
            rT_pad = jnp.full((3, nr_p), PAD_VAL, jnp.float32).at[:, :n2].set(pc2[0].T)

        fwd_min, back_min = chamfer_min_l1(q_pad, rT_pad, tq=self._tq, tr=tr)
        dist_loss = (fwd_min[:n1].mean() + back_min[:n2].mean()) / 2.0
        loss = dist_loss

        if self.smooth_weight > 0 and self.K > 1:
            sm = smoothness_loss(est_flow[0], self._nnT_flat, n1, self.K,
                                 tn=self.smooth_tn)           # Pallas
            loss = loss + self.smooth_weight * sm
        # forward_weight == 0.0 (default) -> forward_smoothness skipped
        return loss


# ------------------------------------------------------------------
# pure-JAX reference (sanity check)
# ------------------------------------------------------------------
def reference_loss(pc1, est_flow, pc2, K=12, max_radius=2, smooth_weight=1.0):
    p1, p2, fl = pc1[0], pc2[0], est_flow[0]
    d = jnp.sum((p1[:, None, :] - p1[None, :, :]) ** 2, -1)
    neg_d, nn = jax.lax.top_k(-d, K)
    dist1 = -neg_d
    nn = jnp.where(dist1 > max_radius, nn[:, 0:1], nn)
    deformed = p1 + fl
    dl1 = jnp.sum(jnp.abs(deformed[:, None, :] - p2[None, :, :]), -1)
    dist_loss = (dl1.min(1).mean() + dl1.min(0).mean()) / 2.0
    neigh = fl[nn]
    diff = neigh[:, :1, :] - neigh[:, 1:, :]
    smooth = jnp.sqrt(jnp.sum(diff ** 2, -1)).mean()
    return dist_loss + smooth_weight * smooth


if __name__ == "__main__":
    key = jax.random.PRNGKey(0)

    # ---- test 1: small clouds (single-tile grids) ----
    k1, k2, k3 = jax.random.split(key, 3)
    N1, N2 = 64, 96
    pc1 = jax.random.uniform(k1, (1, N1, 3), jnp.float32, minval=-2.0, maxval=2.0)
    pc2 = jax.random.uniform(k2, (1, N2, 3), jnp.float32, minval=-2.0, maxval=2.0)
    est_flow = 0.1 * jax.random.normal(k3, (1, N1, 3), jnp.float32)

    loss_mod = GeneralLossPallas(pc1, pc2, dist_mode='knn_points', K=12,
                                 smooth_weight=1.0, max_radius=2, loss_norm=1,
                                 forward_weight=0.0, pc2_smooth=False)
    loss = jax.block_until_ready(loss_mod(pc1, est_flow, pc2))
    ref = jax.block_until_ready(reference_loss(pc1, est_flow, pc2))
    assert jnp.allclose(loss, ref, rtol=1e-2, atol=1e-2), (loss, ref)

    # ---- test 2: larger clouds + small tiles to exercise multi-tile accumulation ----
    k4, k5, k6 = jax.random.split(jax.random.PRNGKey(1), 3)
    M1, M2 = 200, 300
    pc1b = jax.random.uniform(k4, (1, M1, 3), jnp.float32, minval=-2.0, maxval=2.0)
    pc2b = jax.random.uniform(k5, (1, M2, 3), jnp.float32, minval=-2.0, maxval=2.0)
    flowb = 0.1 * jax.random.normal(k6, (1, M1, 3), jnp.float32)

    loss_mod_b = GeneralLossPallas(pc1b, pc2b, dist_mode='knn_points', K=12,
                                   smooth_weight=1.0, max_radius=2, loss_norm=1,
                                   forward_weight=0.0, pc2_smooth=False,
                                   chamfer_tq=64, chamfer_tr=128,
                                   sqdist_tq=64, sqdist_tr=128, smooth_tn=128)
    loss_b = jax.block_until_ready(loss_mod_b(pc1b, flowb, pc2b))
    ref_b = jax.block_until_ready(reference_loss(pc1b, flowb, pc2b))
    assert jnp.allclose(loss_b, ref_b, rtol=1e-2, atol=1e-2), (loss_b, ref_b)

    print("KERNEL_OK")
</pallas_src>

<mosaic_0001>
module attributes {stable_mosaic.version = 11 : i64} {
  func.func @_sqdist_kernel(%arg0: i32, %arg1: i32, %arg2: memref<64x3xf32, #tpu.memory_space<vmem>>, %arg3: memref<3x128xf32, #tpu.memory_space<vmem>>, %arg4: memref<64x128xf32, #tpu.memory_space<vmem>>) attributes {dimension_semantics = [#tpu.dimension_semantics<parallel>, #tpu.dimension_semantics<parallel>], iteration_bounds = array<i64: 1, 1>, scalar_prefetch = 0 : i64, scratch_operands = 0 : i64, tpu.core_type = #tpu.core_type<tc>, window_params = [{transform_indices = @transform_0, window_bounds = array<i64: 64, 3>}, {transform_indices = @transform_1, window_bounds = array<i64: 3, 128>}, {transform_indices = @transform_2, window_bounds = array<i64: 64, 128>}]} {
    %c0 = arith.constant 0 : index
    %c0_0 = arith.constant 0 : index
    %0 = vector.load %arg2[%c0, %c0_0] : memref<64x3xf32, #tpu.memory_space<vmem>>, vector<64x1xf32>
    %c0_1 = arith.constant 0 : index
    %c0_2 = arith.constant 0 : index
    %1 = vector.load %arg3[%c0_1, %c0_2] : memref<3x128xf32, #tpu.memory_space<vmem>>, vector<1x128xf32>
    %2 = vector.broadcast %0 : vector<64x1xf32> to vector<64x128xf32>
    %3 = vector.broadcast %1 : vector<1x128xf32> to vector<64x128xf32>
    %4 = arith.subf %2, %3 : vector<64x128xf32>
    %c0_3 = arith.constant 0 : index
    %c1 = arith.constant 1 : index
    %5 = vector.load %arg2[%c0_3, %c1] : memref<64x3xf32, #tpu.memory_space<vmem>>, vector<64x1xf32>
    %c1_4 = arith.constant 1 : index
    %c0_5 = arith.constant 0 : index
    %6 = vector.load %arg3[%c1_4, %c0_5] : memref<3x128xf32, #tpu.memory_space<vmem>>, vector<1x128xf32>
    %7 = vector.broadcast %5 : vector<64x1xf32> to vector<64x128xf32>
    %8 = vector.broadcast %6 : vector<1x128xf32> to vector<64x128xf32>
    %9 = arith.subf %7, %8 : vector<64x128xf32>
    %c0_6 = arith.constant 0 : index
    %c2 = arith.constant 2 : index
    %10 = vector.load %arg2[%c0_6, %c2] : memref<64x3xf32, #tpu.memory_space<vmem>>, vector<64x1xf32>
    %c2_7 = arith.constant 2 : index
    %c0_8 = arith.constant 0 : index
    %11 = vector.load %arg3[%c2_7, %c0_8] : memref<3x128xf32, #tpu.memory_space<vmem>>, vector<1x128xf32>
    %12 = vector.broadcast %10 : vector<64x1xf32> to vector<64x128xf32>
    %13 = vector.broadcast %11 : vector<1x128xf32> to vector<64x128xf32>
    %14 = arith.subf %12, %13 : vector<64x128xf32>
    %15 = arith.mulf %4, %4 : vector<64x128xf32>
    %16 = arith.mulf %9, %9 : vector<64x128xf32>
    %17 = arith.addf %15, %16 : vector<64x128xf32>
    %18 = arith.mulf %14, %14 : vector<64x128xf32>
    %19 = arith.addf %17, %18 : vector<64x128xf32>
    %c0_9 = arith.constant 0 : index
    %c0_10 = arith.constant 0 : index
    %20 = vector.load %arg4[%c0_9, %c0_10] : memref<64x128xf32, #tpu.memory_space<vmem>>, vector<64x128xf32>
    tpu.vector_store %arg4[%c0_9, %c0_10], %19 {strides = array<i32>} : memref<64x128xf32, #tpu.memory_space<vmem>>, vector<64x128xf32>,
    return
  }
  func.func @transform_0(%arg0: i32, %arg1: i32) -> (i32, i32) {
    %c0_i32 = arith.constant 0 : i32
    %c0_i32_0 = arith.constant 0 : i32
    return %arg0, %c0_i32 : i32, i32
  }
  func.func @transform_1(%arg0: i32, %arg1: i32) -> (i32, i32) {
    %c0_i32 = arith.constant 0 : i32
    %c0_i32_0 = arith.constant 0 : i32
    return %c0_i32, %arg1 : i32, i32
  }
  func.func @transform_2(%arg0: i32, %arg1: i32) -> (i32, i32) {
    %c0_i32 = arith.constant 0 : i32
    return %arg0, %arg1 : i32, i32
  }
}

</mosaic_0001>

<llo_original>
// kernel: tpu_custom_call.1
$region0: #{tpu_custom_call.1}
  #allocation0 [shape = 'u32[]', space=smem, size = 0x4, offset = 0x4, fixed_abs, tag = 'smem constant byte address 0x4 - core index']
  #allocation1 [shape = 'u32[72,128]{1,0:T(1,128)}', space=vmem, size = 0x9000, scoped, tag = 'internal scratch']
  %s0 = inlined_call_operand.vmem [shape: f32[64,3], index: 0, kind: input, shape index: {}]
  %s1 = inlined_call_operand.vmem [shape: f32[3,128], index: 1, kind: input, shape index: {}]
  %s2 = inlined_call_operand.hbm [shape: f32[64,128], index: 2, kind: output, shape index: {}]
  %s3 = sld [smem:[#allocation0]]
  $region18: #{tpu_custom_call.1} parent=0
    _
  %s5 = ssub.s32 1, %s3
  %s6 = scalar_select 0, %s5, %s3
  $region1: #{tpu_custom_call.1} parent=0
    #allocation2 [shape = 'u8[32768]{0}', space=vmem, size = 0x8000, scoped, tag = 'output window, operand 0, single buffered']
    #allocation3 [shape = 's32[1]{0}', space=sflag, size = 0x4, scoped, tag = 'scoped memory for tpu_custom_call.1']
    %7 = vsyncpa [#allocation3], 0
    // Predicated region
    $region2: #{tpu_custom_call.1} parent=1 // pred_check
      _
    $region3: #{tpu_custom_call.1} parent=1 // pred_check_branch
      %9 = sbr.rel (0) target = $region5
    $region4: #{tpu_custom_call.1} parent=1 // pred_region
      _
    $region5: #{tpu_custom_call.1} parent=1 // pred_fallthru
      _
    // Predicated region
    $region6: #{tpu_custom_call.1} parent=1 // pred_check
      _
    $region7: #{tpu_custom_call.1} parent=1 // pred_check_branch
      %11 = sbr.rel (0) target = $region9
    $region8: #{tpu_custom_call.1} parent=1 // pred_region
      _
    $region9: #{tpu_custom_call.1} parent=1 // pred_fallthru
      _
    %v12 = vld [vmem:[%s0] sm:$0xff]
    %v13 = vld [vmem:[%s0 + $0x8] sm:$0xff]
    %v14 = vld [vmem:[%s0 + $0x10] sm:$0xff]
    %v15 = vld [vmem:[%s0 + $0x18] sm:$0xff]
    %v16 = vld [vmem:[%s0 + $0x20] sm:$0xff]
    %v17 = vld [vmem:[%s0 + $0x28] sm:$0xff]
    %v18 = vld [vmem:[%s0 + $0x30] sm:$0xff]
    %v19 = vld [vmem:[%s0 + $0x38] sm:$0xff]
    %v20 = vld [vmem:[%s1] sm:$0x1]
    %22 = vset.pattern.permute.xlu0 0
    %23 = vperm.xlu0 %22, %v12
    %v24 = vpop.permute.xlu0 %23
    %27 = vset.pattern.permute.xlu0 0
    %28 = vperm.xlu0 %27, %v13
    %v29 = vpop.permute.xlu0 %28
    %32 = vset.pattern.permute.xlu0 0
    %33 = vperm.xlu0 %32, %v14
    %v34 = vpop.permute.xlu0 %33
    %37 = vset.pattern.permute.xlu0 0
    %38 = vperm.xlu0 %37, %v15
    %v39 = vpop.permute.xlu0 %38
    %42 = vset.pattern.permute.xlu0 0
    %43 = vperm.xlu0 %42, %v16
    %v44 = vpop.permute.xlu0 %43
    %47 = vset.pattern.permute.xlu0 0
    %48 = vperm.xlu0 %47, %v17
    %v49 = vpop.permute.xlu0 %48
    %52 = vset.pattern.permute.xlu0 0
    %53 = vperm.xlu0 %52, %v18
    %v54 = vpop.permute.xlu0 %53
    %57 = vset.pattern.permute.xlu0 0
    %58 = vperm.xlu0 %57, %v19
    %v59 = vpop.permute.xlu0 %58
    %v61 = vperm.slane %v20, 0
    %v62 = vsub.f32 %v24, %v61
    %v63 = vsub.f32 %v29, %v61
    %v64 = vsub.f32 %v34, %v61
    %v65 = vsub.f32 %v39, %v61
    %v66 = vsub.f32 %v44, %v61
    %v67 = vsub.f32 %v49, %v61
    %v68 = vsub.f32 %v54, %v61
    %v69 = vsub.f32 %v59, %v61
    %v70 = vld [vmem:[%s1 + $0x1] sm:$0x1]
    %71 = vset.pattern.permute.xlu0 1
    %72 = vperm.xlu0 %71, %v12
    %v73 = vpop.permute.xlu0 %72
    %75 = vset.pattern.permute.xlu0 1
    %76 = vperm.xlu0 %75, %v13
    %v77 = vpop.permute.xlu0 %76
    %79 = vset.pattern.permute.xlu0 1
    %80 = vperm.xlu0 %79, %v14
    %v81 = vpop.permute.xlu0 %80
    %83 = vset.pattern.permute.xlu0 1
    %84 = vperm.xlu0 %83, %v15
    %v85 = vpop.permute.xlu0 %84
    %87 = vset.pattern.permute.xlu0 1
    %88 = vperm.xlu0 %87, %v16
    %v89 = vpop.permute.xlu0 %88
    %91 = vset.pattern.permute.xlu0 1
    %92 = vperm.xlu0 %91, %v17
    %v93 = vpop.permute.xlu0 %92
    %95 = vset.pattern.permute.xlu0 1
    %96 = vperm.xlu0 %95, %v18
    %v97 = vpop.permute.xlu0 %96
    %99 = vset.pattern.permute.xlu0 1
    %100 = vperm.xlu0 %99, %v19
    %v101 = vpop.permute.xlu0 %100
    %v103 = vperm.slane %v70, 0
    %v104 = vsub.f32 %v73, %v103
    %v105 = vsub.f32 %v77, %v103
    %v106 = vsub.f32 %v81, %v103
    %v107 = vsub.f32 %v85, %v103
    %v108 = vsub.f32 %v89, %v103
    %v109 = vsub.f32 %v93, %v103
    %v110 = vsub.f32 %v97, %v103
    %v111 = vsub.f32 %v101, %v103
    %v112 = vld [vmem:[%s1 + $0x2] sm:$0x1]
    %113 = vset.pattern.permute.xlu0 2
    %114 = vperm.xlu0 %113, %v12
    %v115 = vpop.permute.xlu0 %114
    %117 = vset.pattern.permute.xlu0 2
    %118 = vperm.xlu0 %117, %v13
    %v119 = vpop.permute.xlu0 %118
    %121 = vset.pattern.permute.xlu0 2
    %122 = vperm.xlu0 %121, %v14
    %v123 = vpop.permute.xlu0 %122
    %125 = vset.pattern.permute.xlu0 2
    %126 = vperm.xlu0 %125, %v15
    %v127 = vpop.permute.xlu0 %126
    %129 = vset.pattern.permute.xlu0 2
    %130 = vperm.xlu0 %129, %v16
    %v131 = vpop.permute.xlu0 %130
    %133 = vset.pattern.permute.xlu0 2
    %134 = vperm.xlu0 %133, %v17
    %v135 = vpop.permute.xlu0 %134
    %137 = vset.pattern.permute.xlu0 2
    %138 = vperm.xlu0 %137, %v18
    %v139 = vpop.permute.xlu0 %138
    %141 = vset.pattern.permute.xlu0 2
    %142 = vperm.xlu0 %141, %v19
    %v143 = vpop.permute.xlu0 %142
    %v145 = vperm.slane %v112, 0
    %v146 = vsub.f32 %v115, %v145
    %v147 = vsub.f32 %v119, %v145
    %v148 = vsub.f32 %v123, %v145
    %v149 = vsub.f32 %v127, %v145
    %v150 = vsub.f32 %v131, %v145
    %v151 = vsub.f32 %v135, %v145
    %v152 = vsub.f32 %v139, %v145
    %v153 = vsub.f32 %v143, %v145
    %v154 = vmul.f32 %v62, %v62
    %v155 = vmul.f32 %v63, %v63
    %v156 = vmul.f32 %v64, %v64
    %v157 = vmul.f32 %v65, %v65
    %v158 = vmul.f32 %v66, %v66
    %v159 = vmul.f32 %v67, %v67
    %v160 = vmul.f32 %v68, %v68
    %v161 = vmul.f32 %v69, %v69
    %v162 = vmul.f32 %v104, %v104
    %v163 = vmul.f32 %v105, %v105
    %v164 = vmul.f32 %v106, %v106
    %v165 = vmul.f32 %v107, %v107
    %v166 = vmul.f32 %v108, %v108
    %v167 = vmul.f32 %v109, %v109
    %v168 = vmul.f32 %v110, %v110
    %v169 = vmul.f32 %v111, %v111
    %v170 = vadd.f32 %v154, %v162
    %v171 = vadd.f32 %v155, %v163
    %v172 = vadd.f32 %v156, %v164
    %v173 = vadd.f32 %v157, %v165
    %v174 = vadd.f32 %v158, %v166
    %v175 = vadd.f32 %v159, %v167
    %v176 = vadd.f32 %v160, %v168
    %v177 = vadd.f32 %v161, %v169
    %v178 = vmul.f32 %v146, %v146
    %v179 = vmul.f32 %v147, %v147
    %v180 = vmul.f32 %v148, %v148
    %v181 = vmul.f32 %v149, %v149
    %v182 = vmul.f32 %v150, %v150
    %v183 = vmul.f32 %v151, %v151
    %v184 = vmul.f32 %v152, %v152
    %v185 = vmul.f32 %v153, %v153
    %v186 = vadd.f32 %v170, %v178
    %v187 = vadd.f32 %v171, %v179
    %v188 = vadd.f32 %v172, %v180
    %v189 = vadd.f32 %v173, %v181
    %v190 = vadd.f32 %v174, %v182
    %v191 = vadd.f32 %v175, %v183
    %v192 = vadd.f32 %v176, %v184
    %v193 = vadd.f32 %v177, %v185
    %194 = vst [vmem:[#allocation2] sm:$0xff] %v186
    %195 = vst [vmem:[#allocation2 + $0x8] sm:$0xff] %v187
    %196 = vst [vmem:[#allocation2 + $0x10] sm:$0xff] %v188
    %197 = vst [vmem:[#allocation2 + $0x18] sm:$0xff] %v189
    %198 = vst [vmem:[#allocation2 + $0x20] sm:$0xff] %v190
    %199 = vst [vmem:[#allocation2 + $0x28] sm:$0xff] %v191
    %200 = vst [vmem:[#allocation2 + $0x30] sm:$0xff] %v192
    %201 = vst [vmem:[#allocation2 + $0x38] sm:$0xff] %v193
    // Predicated region
    $region10: #{tpu_custom_call.1} parent=1 // pred_check
      _
    $region11: #{tpu_custom_call.1} parent=1 // pred_check_branch
      %203 = sbr.rel (0) target = $region13
    $region12: #{tpu_custom_call.1} parent=1 // pred_region
      %205 = vsyncadd [#allocation3], 0
      %s206 = sshll.u32 [#allocation2], 4
      %s207 = int_to_ptr.vmem [resolvable:$true] %s206
      %s208 = sshll.u32 %s2, 4
      %s209 = int_to_ptr.hbm [resolvable:$true] %s208
      %214 = dma.vmem_to_hbm [thread:$0]  %s207, 1024, %s209, [#allocation3], 128, 128, 8
    $region13: #{tpu_custom_call.1} parent=1 // pred_fallthru
      _
    // Predicated region
    $region14: #{tpu_custom_call.1} parent=1 // pred_check
      _
    $region15: #{tpu_custom_call.1} parent=1 // pred_check_branch
      %216 = sbr.rel (0) target = $region17
    $region16: #{tpu_custom_call.1} parent=1 // pred_region
      %218 = dma.done [#allocation3], 1024
    $region17: #{tpu_custom_call.1} parent=1 // pred_fallthru
      _
    %219 = vsyncpa [#allocation3], 1

</llo_original>
